<compile_context>
chip_gen: v7x
topology: tpu7x:2x2x1
jax: 0.10.0
libtpu: 0.0.40
codegen_flags: <defaults>
</compile_context>

<pallas_src>
import functools

import jax
import jax.numpy as jnp
from jax import lax
from jax.experimental import pallas as pl
from jax.experimental.pallas import tpu as pltpu


# ---------------------------------------------------------------------------
# Fused Pallas kernel
# ---------------------------------------------------------------------------

def _witmem_fused_kernel(x_ref, m1_ref, m2_ref, wfc_ref, o_ref, *,
                         Bblk, H, PHS, roll_sign):
    f32 = jnp.float32
    N = Bblk * PHS                                   # stacked rows this step
    lanes_in = x_ref.shape[-1]

    # Bblk images stacked along the sublane/M axis, lane-dense (w, cin) columns.
    xd = x_ref[...].reshape(N, lanes_in)

    # Per-image valid-row mask: rows H..PHS-1 of every image are zero padding.
    row = lax.broadcasted_iota(jnp.int32, (N, 1), 0)
    valid = (row % PHS) < H
    mask = lambda t: jnp.where(valid, t, 0.0)

    def tap(x, delta):
        # out[r] = x[r + delta] via an XLU rotate.  Wrapped / cross-image rows are
        # harmless: the source row is a zero padding row (PHS >= H+1) or the
        # destination row is a padding row that gets masked.  roll_sign (from the
        # one-time wrapper probe) absorbs the rotate-direction convention.
        return pltpu.roll(x, (roll_sign * (-delta)) % N, axis=0)

    def conv3x3(xs, m_ref):
        # 3x3 / pad=1 conv on a lane-dense slab: three dense MXU matmuls against
        # banded (lanes_in, lanes_out) weight matrices (kw taps + Cin->Cout folded).
        acc = jnp.dot(tap(xs, -1), m_ref[0], preferred_element_type=f32)   # kh = 0
        acc = acc + jnp.dot(xs, m_ref[1], preferred_element_type=f32)      # kh = 1
        acc = acc + jnp.dot(tap(xs, +1), m_ref[2], preferred_element_type=f32)  # kh = 2
        return acc

    # ---- Conv1 (Scale(1/G) folded into weights, zero bias) -> Relu ----------
    y1 = mask(jnp.maximum(conv3x3(xd, m1_ref), 0.0))          # (N, W*C1)

    # ---- Conv2 (zero bias) -> Add(residual y1) -> Tanh ----------------------
    y2 = mask(jnp.tanh(conv3x3(y1, m2_ref) + y1))             # (N, W*C1)

    # ---- GlobalAveragePool -> Gemm (zero bias) -> Sigmoid --------------------
    # 1/(H*W) and the Gemm transpose are folded into wfc_ref; NC is lane-padded.
    pooled = jnp.sum(y2.reshape(Bblk, PHS, -1), axis=1)       # (Bblk, W*C1)
    logits = jnp.dot(pooled, wfc_ref[...], preferred_element_type=f32)   # (Bblk, NCP)
    o_ref[0] = 1.0 / (1.0 + jnp.exp(-logits))                 # sigmoid


# ---------------------------------------------------------------------------
# One-time weight prep + jitted forward (prep hoisted out of the per-call path)
# ---------------------------------------------------------------------------

def _banded_conv_weights(w_oihw, W, pad, scale=1.0):
    """Fold a conv's kw taps + Cin->Cout contraction into per-kh banded matrices.

    M[kh, wi*Cin + ci, wo*Cout + co] = w[co, ci, kh, wi - wo + pad] (0 outside
    the band).  W-direction zero padding is implicit (absent matrix rows).
    """
    Cout, Cin, KH, KW = w_oihw.shape
    wi = jnp.arange(W)[:, None, None]
    wo = jnp.arange(W)[None, :, None]
    kw = jnp.arange(KW)[None, None, :]
    sel = (wi - wo + pad == kw).astype(w_oihw.dtype)          # (W, W, KW)
    m = jnp.einsum("abk,oihk->haibo", sel, w_oihw) * scale    # (KH, W, Cin, W, Cout)
    return m.reshape(KH, W * Cin, W * Cout)


def _probe_roll_sign():
    """One-time direction probe for pltpu.roll (guards the rotate convention)."""
    def k(x_ref, o_ref):
        o_ref[...] = pltpu.roll(x_ref[...], 1, axis=0)
    x = jnp.broadcast_to(jnp.arange(8, dtype=jnp.int32)[:, None], (8, 128))
    r = pl.pallas_call(k, out_shape=jax.ShapeDtypeStruct((8, 128), jnp.int32))(x)
    # jnp.roll semantics: row 1 now holds old row 0.
    return 1 if int(r[1, 0]) == 0 else -1


def make_witmem_forward(params, G, x_shape):
    """Prepare weights once and return a jitted forward(x_nchw) -> (B, NC)."""
    B, Cin, H, W = x_shape
    C1 = params["conv1_w"].shape[0]
    NC = params["fc_w"].shape[0]
    assert params["conv1_w"].shape[2:] == (3, 3), "representative net uses 3x3 / pad=1 convs"
    assert params["conv2_w"].shape == (C1, C1, 3, 3)

    LN = W * C1                                   # lane-dense working width
    assert LN % 128 == 0, "W * C1 must be a multiple of 128 (lane-dense slabs)"
    LIN = pl.cdiv(W * Cin, 128) * 128             # lane-dense conv1 input width
    assert LIN % W == 0
    CinP = LIN // W                               # Cin zero-padded -> dense vregs
    NCP = pl.cdiv(NC, 128) * 128                  # lane-dense logits width
    PHS = pl.cdiv(H + 1, 8) * 8                   # per-image rows: >=1 zero row between
                                                  # stacked images + sublane alignment
    Bblk = max(1, min(B, pl.cdiv(256, PHS)))      # images per step: M = Bblk*PHS ~ 256
    nsteps = pl.cdiv(B, Bblk)
    Bpad = nsteps * Bblk

    # --- one-time weight prep (never re-run per forward call) ---------------
    w1p = jnp.pad(params["conv1_w"].astype(jnp.float32),
                  ((0, 0), (0, CinP - Cin), (0, 0), (0, 0)))
    m1 = _banded_conv_weights(w1p, W, pad=1, scale=1.0 / G)                  # (3, LIN, LN)
    m2 = _banded_conv_weights(params["conv2_w"].astype(jnp.float32), W, pad=1)  # (3, LN, LN)
    wfc = jnp.tile(params["fc_w"].astype(jnp.float32).T / (H * W), (W, 1))   # (LN, NC)
    wfc = jnp.pad(wfc, ((0, 0), (0, NCP - NC)))                               # (LN, NCP)

    roll_sign = _probe_roll_sign()

    kern = functools.partial(_witmem_fused_kernel,
                             Bblk=Bblk, H=H, PHS=PHS, roll_sign=roll_sign)
    call = pl.pallas_call(
        kern,
        out_shape=jax.ShapeDtypeStruct((nsteps, Bblk, NCP), jnp.float32),
        grid=(nsteps,),
        in_specs=[
            pl.BlockSpec((Bblk, PHS, LIN), lambda b: (b, 0, 0)),   # Bblk images per step
            pl.BlockSpec((3, LIN, LN), lambda b: (0, 0, 0)),       # conv1 weights (resident)
            pl.BlockSpec((3, LN, LN), lambda b: (0, 0, 0)),        # conv2 weights (resident)
            pl.BlockSpec((LN, NCP), lambda b: (0, 0)),             # GAP+FC matrix (resident)
        ],
        out_specs=pl.BlockSpec((1, Bblk, NCP), lambda b: (b, 0, 0)),
        compiler_params=pltpu.CompilerParams(
            dimension_semantics=("parallel",)),   # v7x: shards batch steps across TCs
    )

    @jax.jit
    def forward(x_nchw):
        # NCHW -> lane-dense (w, c) row slabs; channel-pad Cin->CinP, row-pad H->PHS
        # (the inter-image isolation rows), batch-pad B->Bpad.  All one-time XLA ops
        # under jit — the kernel reads ready, correctly-sized blocks (no in-kernel copies).
        x = jnp.transpose(x_nchw.astype(jnp.float32), (0, 2, 3, 1))      # (B, H, W, Cin)
        x = jnp.pad(x, ((0, Bpad - B), (0, PHS - H), (0, 0), (0, CinP - Cin)))
        x = x.reshape(Bpad, PHS, W * CinP)
        out = call(x, m1, m2, wfc)                                        # (nsteps, Bblk, NCP)
        return out.reshape(Bpad, NCP)[:B, :NC]

    return forward


# ---------------------------------------------------------------------------
# Pure-JAX reference (for numeric verification)
# ---------------------------------------------------------------------------

def _ref_forward(x_nchw, params, G):
    x = jnp.transpose(x_nchw, (0, 2, 3, 1))
    w1 = jnp.transpose(params["conv1_w"], (2, 3, 1, 0))
    w2 = jnp.transpose(params["conv2_w"], (2, 3, 1, 0))
    dn = ("NHWC", "HWIO", "NHWC")
    prec = lax.Precision.HIGHEST
    y1 = lax.conv_general_dilated(x, w1, (1, 1), [(1, 1), (1, 1)],
                                  dimension_numbers=dn, precision=prec)
    y1 = jnp.maximum((y1 + params["conv1_b"]) * (1.0 / G), 0.0)
    y2 = lax.conv_general_dilated(y1, w2, (1, 1), [(1, 1), (1, 1)],
                                  dimension_numbers=dn, precision=prec)
    y2 = jnp.tanh(y2 + params["conv2_b"] + y1)
    pooled = jnp.mean(y2, axis=(1, 2))
    return jax.nn.sigmoid(pooled @ params["fc_w"].T + params["fc_b"])


# ---------------------------------------------------------------------------

if __name__ == "__main__":
    key = jax.random.PRNGKey(0)
    B, Cin, H, W = 2, 4, 16, 16
    C1 = 8                # conv1/conv2 output channels (equal, so the residual Add is valid)
    KH = KW = 3
    NUM_CLASSES = 10
    G = 4.0

    k_x, k_w1, k_w2, k_fc = jax.random.split(key, 4)
    x = jax.random.normal(k_x, (B, Cin, H, W), jnp.float32)          # PyTorch NCHW input

    params = {
        # PyTorch-convention conv weights [Cout, Cin, KH, KW]; biases are zeros
        # (makeNodeConv2d / makeNodeLinear always build zero biases).
        "conv1_w": 0.1 * jax.random.normal(k_w1, (C1, Cin, KH, KW), jnp.float32),
        "conv1_b": jnp.zeros((C1,), jnp.float32),
        "conv2_w": 0.1 * jax.random.normal(k_w2, (C1, C1, KH, KW), jnp.float32),
        "conv2_b": jnp.zeros((C1,), jnp.float32),
        # PyTorch-convention linear weight [out_features, in_features]
        "fc_w": 0.1 * jax.random.normal(k_fc, (NUM_CLASSES, C1), jnp.float32),
        "fc_b": jnp.zeros((NUM_CLASSES,), jnp.float32),
    }

    forward = make_witmem_forward(params, G, x.shape)     # one-time weight prep
    out = jax.block_until_ready(forward(x))
    ref = jax.block_until_ready(_ref_forward(x, params, G))

    assert out.shape == (B, NUM_CLASSES)
    err = float(jnp.max(jnp.abs(out - ref)))
    assert jnp.allclose(out, ref, atol=1e-4, rtol=1e-4), f"max abs err {err}"

    print("KERNEL_OK")
</pallas_src>

<mosaic_0001>
module attributes {stable_mosaic.version = 11 : i64} {
  func.func @k(%arg0: memref<8x128xi32, #tpu.memory_space<vmem>>, %arg1: memref<8x128xi32, #tpu.memory_space<vmem>>) attributes {dimension_semantics = [], scalar_prefetch = 0 : i64, scratch_operands = 0 : i64, tpu.core_type = #tpu.core_type<tc>} {
    %c0 = arith.constant 0 : index
    %c0_0 = arith.constant 0 : index
    %0 = vector.load %arg0[%c0, %c0_0] : memref<8x128xi32, #tpu.memory_space<vmem>>, vector<8x128xi32>
    %c1_i32 = arith.constant 1 : i32
    %1 = tpu.dynamic_rotate %0 by %c1_i32 dim 0 : vector<8x128xi32>, i32 -> vector<8x128xi32>
    %c0_1 = arith.constant 0 : index
    %c0_2 = arith.constant 0 : index
    %2 = vector.load %arg1[%c0_1, %c0_2] : memref<8x128xi32, #tpu.memory_space<vmem>>, vector<8x128xi32>
    tpu.vector_store %arg1[%c0_1, %c0_2], %1 {strides = array<i32>} : memref<8x128xi32, #tpu.memory_space<vmem>>, vector<8x128xi32>,
    return
  }
}

</mosaic_0001>

<llo_original>
// kernel: tpu_custom_call.1
$region0: #{tpu_custom_call.1}
  #allocation0 [shape = 'u32[]', space=smem, size = 0x4, offset = 0x4, fixed_abs, tag = 'smem constant byte address 0x4 - core index']
  #allocation1 [shape = 'u32[144,128]{1,0:T(1,128)}', space=vmem, size = 0x12000, scoped, tag = 'internal scratch']
  %s0 = inlined_call_operand.hbm [shape: s32[8,128], index: 0, kind: input, shape index: {}]
  %s1 = inlined_call_operand.hbm [shape: s32[8,128], index: 1, kind: output, shape index: {}]
  %s2 = sld [smem:[#allocation0]]
  $region18: #{tpu_custom_call.1} parent=0
    _
  %s4 = ssub.s32 1, %s2
  %s5 = scalar_select 0, %s4, %s2
  $region1: #{tpu_custom_call.1} parent=0
    #allocation2 [shape = 'u8[4096]{0}', space=vmem, size = 0x1000, scoped, tag = 'input window, operand 0, single buffered']
    #allocation3 [shape = 's32[1]{0}', space=sflag, size = 0x4, scoped, tag = 'scoped memory for tpu_custom_call.1']
    #allocation4 [shape = 's32[1]{0}', space=sflag, size = 0x4, scoped, tag = 'scoped memory for tpu_custom_call.1']
    #allocation5 [shape = 'u8[4096]{0}', space=vmem, size = 0x1000, scoped, tag = 'output window, operand 0, single buffered']
    %6 = vsyncpa [#allocation3], 0
    %7 = vsyncpa [#allocation4], 0
    // Predicated region
    $region2: #{tpu_custom_call.1} parent=1 // pred_check
      _
    $region3: #{tpu_custom_call.1} parent=1 // pred_check_branch
      %9 = sbr.rel (0) target = $region5
    $region4: #{tpu_custom_call.1} parent=1 // pred_region
      %s11 = ssub.s32 128, 128
      %12 = vsyncadd [#allocation3], %s11
      %s14 = sshll.u32 [#allocation2], 4
      %s15 = int_to_ptr.vmem [resolvable:$true] %s14
      %17 = dma.hbm_to_vmem [thread:$0]  %s0, 128, %s15, [#allocation3]
    $region5: #{tpu_custom_call.1} parent=1 // pred_fallthru
      _
    // Predicated region
    $region6: #{tpu_custom_call.1} parent=1 // pred_check
      _
    $region7: #{tpu_custom_call.1} parent=1 // pred_check_branch
      %19 = sbr.rel (0) target = $region9
    $region8: #{tpu_custom_call.1} parent=1 // pred_region
      %20 = dma.done [#allocation3], 128
    $region9: #{tpu_custom_call.1} parent=1 // pred_fallthru
      _
    %v21 = vld [vmem:[#allocation2] sm:$0xff]
    %v22 = vrot.slane %v21, 7
    %23 = vst [vmem:[#allocation5] sm:$0xff] %v22
    // Predicated region
    $region10: #{tpu_custom_call.1} parent=1 // pred_check
      _
    $region11: #{tpu_custom_call.1} parent=1 // pred_check_branch
      %25 = sbr.rel (0) target = $region13
    $region12: #{tpu_custom_call.1} parent=1 // pred_region
      %s27 = ssub.s32 128, 128
      %28 = vsyncadd [#allocation4], %s27
      %s30 = sshll.u32 [#allocation5], 4
      %s31 = int_to_ptr.vmem [resolvable:$true] %s30
      %33 = dma.vmem_to_hbm [thread:$0]  %s31, 128, %s1, [#allocation4]
    $region13: #{tpu_custom_call.1} parent=1 // pred_fallthru
      _
    // Predicated region
    $region14: #{tpu_custom_call.1} parent=1 // pred_check
      _
    $region15: #{tpu_custom_call.1} parent=1 // pred_check_branch
      %35 = sbr.rel (0) target = $region17
    $region16: #{tpu_custom_call.1} parent=1 // pred_region
      %36 = dma.done [#allocation4], 128
    $region17: #{tpu_custom_call.1} parent=1 // pred_fallthru
      _
    %37 = vsyncpa [#allocation3], 1
    %38 = vsyncpa [#allocation4], 1

</llo_original>
